<compile_context>
chip_gen: v5e
topology: v5e:2x2
jax: 0.10.0
libtpu: 0.0.40
codegen_flags: <defaults>
</compile_context>

<pallas_src>
import functools

import jax
import jax.numpy as jnp
from jax.experimental import pallas as pl
from jax.experimental.pallas import tpu as pltpu


# ----------------------------- utilities ------------------------------------

def _round_up(x: int, m: int) -> int:
    return -(-x // m) * m


def _padded_tile_bytes(shape, dtype) -> int:
    """VMEM footprint of a tile after lane (128) / sublane (8 * packing) padding."""
    itemsize = jnp.dtype(dtype).itemsize
    sublane = 8 * max(1, 4 // itemsize)          # f32: 8, bf16: 16, int8/fp8: 32
    if len(shape) == 1:
        rows, cols = 1, int(shape[0])
    else:
        rows, cols = int(shape[-2]), int(shape[-1])
    rows_p = _round_up(max(1, rows), sublane)
    cols_p = _round_up(max(1, cols), 128)
    lead = 1
    for d in shape[:-2]:
        lead *= int(d)
    return lead * rows_p * cols_p * itemsize


def _vmem_capacity_bytes() -> int:
    """Per-TensorCore VMEM capacity; conservative fallback if the query fails."""
    try:
        cap = int(pltpu.get_tpu_info().vmem_capacity_bytes)
        if cap > 0:
            return cap
    except Exception:
        pass
    return 64 << 20   # v7x per-core size; safe lower bound for v5e/v6e too


_TARGET_X_TILE_BYTES = 4 << 20   # amortize ~0.35 us per grid step
_MAX_BATCH_TILE = 2048
_MAX_K_TILE = 2048


def _pick_batch_tile(batch, lane_cols, itemsize, footprint_fn, budget):
    """Batch tile: big enough to amortize per-step overhead, >=2 tiles for
    dual-TensorCore sharding when the batch allows it, small enough to fit."""
    if batch <= 16:
        tb = batch                                # full dim satisfies (8,128) rule
    else:
        per_row = _round_up(lane_cols, 128) * itemsize
        tb_target = max(8, (_TARGET_X_TILE_BYTES // per_row) // 8 * 8)
        tb_target = min(tb_target, _MAX_BATCH_TILE)
        n_tiles = max(2, pl.cdiv(batch, tb_target))     # >=2 batch tiles (v7x megacore)
        tb = min(_round_up(-(-batch // n_tiles), 8), _round_up(batch, 8))
    while tb > 8 and footprint_fn(tb) > budget:
        tb = max(8, ((tb // 2) + 7) // 8 * 8)
    return tb


def _pick_k_tile(d_pad: int, cap: int = _MAX_K_TILE) -> int:
    """Largest multiple of 128 <= cap that divides d_pad (d_pad is a mult. of 128)."""
    t = (min(cap, d_pad) // 128) * 128
    while t > 128:
        if d_pad % t == 0:
            return t
        t -= 128
    return 128


# ------------------------------- kernels -------------------------------------

def _fused_kernel(x_ref, w_ref, b_ref, o_ref, *, apply_softmax: bool):
    """Fast path: W + bias VMEM-resident (constant block index), x streams over the
    batch grid axis. One MXU dot + f32 bias/softmax per batch tile."""
    logits = jnp.dot(x_ref[...], w_ref[...], preferred_element_type=jnp.float32)
    logits = logits + b_ref[...]                  # (1, C) f32 bias broadcasts
    if apply_softmax:
        m = jnp.max(logits, axis=-1, keepdims=True)
        e = jnp.exp(logits - m)
        denom = jnp.sum(e, axis=-1, keepdims=True)
        logits = e * pl.reciprocal(denom, approx=True)   # EUP slot; ~1e-3 rel err
    o_ref[...] = logits.astype(o_ref.dtype)


def _kreduce_kernel(x_ref, w_ref, b_ref, o_ref, acc_ref, *, apply_softmax: bool):
    """Fallback for very large feature dims: grid=(batch_tiles, k_tiles). Reduce
    x_tile @ w_tile into an f32 accumulator; bias + softmax on the last K step."""
    k = pl.program_id(1)

    @pl.when(k == 0)
    def _():
        acc_ref[...] = jnp.zeros_like(acc_ref)

    acc_ref[...] += jnp.dot(x_ref[...], w_ref[...], preferred_element_type=jnp.float32)

    @pl.when(k == pl.num_programs(1) - 1)
    def _():
        logits = acc_ref[...] + b_ref[...]
        if apply_softmax:
            m = jnp.max(logits, axis=-1, keepdims=True)
            e = jnp.exp(logits - m)
            denom = jnp.sum(e, axis=-1, keepdims=True)
            logits = e * pl.reciprocal(denom, approx=True)
        o_ref[...] = logits.astype(o_ref.dtype)


# ------------------------------- wrapper --------------------------------------

def classifier_no_hidden_forward(
    x,
    w,
    b,
    *,
    training: bool = False,
    force_k_reduction: bool = False,
    k_tile: int | None = None,
):
    """Forward pass of ClassifierNoHiddenNet.

    x: (B, input_size); w: (input_size, n_classes) (transposed vs. PyTorch
    Linear.weight); b: (n_classes,). training=False (eval) applies Softmax(dim=1).

    Inputs stream in their own dtype (no hidden wrapper-side casts) — pass bf16
    x / w to halve HBM traffic. Accumulation / bias / softmax are f32; the output
    dtype follows x.dtype.
    """
    B, D = x.shape
    C = w.shape[1]
    out_dtype = x.dtype
    apply_softmax = not training

    vmem_cap = _vmem_capacity_bytes()
    budget = int(0.55 * vmem_cap)                  # tile-sizing budget (headroom)
    vmem_limit = max(32 << 20, int(0.75 * vmem_cap))

    b2d = b.reshape(1, C).astype(jnp.float32)

    x_itemsize = jnp.dtype(x.dtype).itemsize
    w_resident_bytes = _padded_tile_bytes((D, C), w.dtype)
    bias_bytes = _padded_tile_bytes((1, C), jnp.float32)

    def fast_footprint(tb):
        return (w_resident_bytes + bias_bytes
                + 2 * _padded_tile_bytes((tb, D), x.dtype)     # double-buffered x
                + 2 * _padded_tile_bytes((tb, C), out_dtype))  # double-buffered out

    use_fast = (not force_k_reduction) and fast_footprint(8) <= budget

    if use_fast:
        TB = _pick_batch_tile(B, D, x_itemsize, fast_footprint, budget)
        nb = pl.cdiv(B, TB)
        kernel = functools.partial(_fused_kernel, apply_softmax=apply_softmax)
        return pl.pallas_call(
            kernel,
            out_shape=jax.ShapeDtypeStruct((B, C), out_dtype),
            grid_spec=pltpu.PrefetchScalarGridSpec(
                num_scalar_prefetch=0,
                grid=(nb,),
                in_specs=[
                    pl.BlockSpec((TB, D), lambda i: (i, 0)),   # x: streamed per tile
                    pl.BlockSpec((D, C), lambda i: (0, 0)),    # W: truly VMEM-resident
                    pl.BlockSpec((1, C), lambda i: (0, 0)),    # bias: VMEM-resident
                ],
                out_specs=pl.BlockSpec((TB, C), lambda i: (i, 0)),
            ),
            compiler_params=pltpu.CompilerParams(
                dimension_semantics=("parallel",),
                vmem_limit_bytes=vmem_limit,
            ),
        )(x, w, b2d)

    # ---- fallback: feature dim too large for a resident W -> K reduction ----
    if k_tile is not None:
        assert k_tile % 128 == 0, "k_tile must be a multiple of 128"
        TK = k_tile
        D_pad = _round_up(D, TK)
    else:
        D_pad = _round_up(D, 128)
        TK = _pick_k_tile(D_pad)

    x_in, w_in = x, w
    if D_pad != D:
        # Zero-padding the reduced dim keeps the dot exact and the K tile bounded.
        x_in = jnp.pad(x_in, ((0, 0), (0, D_pad - D)))
        w_in = jnp.pad(w_in, ((0, D_pad - D), (0, 0)))

    def kred_footprint(tb):
        return (2 * _padded_tile_bytes((tb, TK), x.dtype)
                + 2 * _padded_tile_bytes((TK, C), w.dtype)
                + bias_bytes
                + 2 * _padded_tile_bytes((tb, C), out_dtype)
                + _padded_tile_bytes((tb, C), jnp.float32))    # f32 accumulator

    TB = _pick_batch_tile(B, TK, x_itemsize, kred_footprint, budget)
    nb = pl.cdiv(B, TB)
    nk = D_pad // TK

    kernel = functools.partial(_kreduce_kernel, apply_softmax=apply_softmax)
    return pl.pallas_call(
        kernel,
        out_shape=jax.ShapeDtypeStruct((B, C), out_dtype),
        grid_spec=pltpu.PrefetchScalarGridSpec(
            num_scalar_prefetch=0,
            grid=(nb, nk),
            in_specs=[
                pl.BlockSpec((TB, TK), lambda i, k: (i, k)),   # x: stream batch & K
                pl.BlockSpec((TK, C), lambda i, k: (k, 0)),    # W: streamed over K
                pl.BlockSpec((1, C), lambda i, k: (0, 0)),     # bias: resident
            ],
            out_specs=pl.BlockSpec((TB, C), lambda i, k: (i, 0)),
            scratch_shapes=[pltpu.VMEM((TB, C), jnp.float32)],
        ),
        compiler_params=pltpu.CompilerParams(
            dimension_semantics=("parallel", "arbitrary"),
            vmem_limit_bytes=vmem_limit,
        ),
    )(x_in, w_in, b2d)


# ------------------------------- reference ------------------------------------

def _reference(x, w, b, *, training=False):
    logits = x @ w + b[None, :]
    if not training:
        logits = jax.nn.softmax(logits, axis=1)
    return logits


if __name__ == "__main__":
    # Shapes consistent with the module: batch=8, input_size=32, n_classes=8.
    batch, input_size, n_classes = 8, 32, 8

    key = jax.random.PRNGKey(0)
    kx, kw, kb = jax.random.split(key, 3)

    x = jax.random.normal(kx, (batch, input_size), dtype=jnp.float32)
    bound = 1.0 / (float(input_size) ** 0.5)
    w = jax.random.uniform(kw, (input_size, n_classes), dtype=jnp.float32,
                           minval=-bound, maxval=bound)
    b = jax.random.uniform(kb, (n_classes,), dtype=jnp.float32,
                           minval=-bound, maxval=bound)

    ref_eval = _reference(x, w, b, training=False)
    ref_train = _reference(x, w, b, training=True)

    # Eval mode (fast fused path, W resident). approx reciprocal -> ~1e-3 rel.
    out_eval = jax.block_until_ready(classifier_no_hidden_forward(x, w, b, training=False))
    assert out_eval.shape == (batch, n_classes)
    assert jnp.allclose(out_eval, ref_eval, atol=5e-3, rtol=5e-3)
    assert jnp.allclose(jnp.sum(out_eval, axis=1), jnp.ones((batch,)), atol=5e-3)

    # Training mode (raw logits, no softmax).
    out_train = jax.block_until_ready(classifier_no_hidden_forward(x, w, b, training=True))
    assert jnp.allclose(out_train, ref_train, atol=1e-4, rtol=1e-4)

    # Medium case exercising multiple batch tiles on the fast path (nb >= 2).
    b1, d1, c1 = 64, 256, 16
    k1 = jax.random.PRNGKey(1)
    kx1, kw1, kb1 = jax.random.split(k1, 3)
    x1 = jax.random.normal(kx1, (b1, d1), dtype=jnp.float32)
    bnd1 = 1.0 / (float(d1) ** 0.5)
    w1 = jax.random.uniform(kw1, (d1, c1), dtype=jnp.float32, minval=-bnd1, maxval=bnd1)
    bb1 = jax.random.uniform(kb1, (c1,), dtype=jnp.float32, minval=-bnd1, maxval=bnd1)
    out1 = jax.block_until_ready(classifier_no_hidden_forward(x1, w1, bb1, training=False))
    assert jnp.allclose(out1, _reference(x1, w1, bb1, training=False), atol=5e-3, rtol=5e-3)

    # Forced K-reduction fallback path (large-feature-dim regime) at small shapes,
    # with a ragged feature dim that gets zero-padded to a multiple of the K tile.
    b2, d2, c2 = 16, 300, 8
    k2 = jax.random.PRNGKey(2)
    kx2, kw2, kb2 = jax.random.split(k2, 3)
    x2 = jax.random.normal(kx2, (b2, d2), dtype=jnp.float32)
    bnd2 = 1.0 / (float(d2) ** 0.5)
    w2 = jax.random.uniform(kw2, (d2, c2), dtype=jnp.float32, minval=-bnd2, maxval=bnd2)
    bb2 = jax.random.uniform(kb2, (c2,), dtype=jnp.float32, minval=-bnd2, maxval=bnd2)
    out2 = jax.block_until_ready(
        classifier_no_hidden_forward(x2, w2, bb2, training=False,
                                     force_k_reduction=True, k_tile=128))
    assert jnp.allclose(out2, _reference(x2, w2, bb2, training=False), atol=5e-3, rtol=5e-3)

    print("KERNEL_OK")
</pallas_src>

<mosaic_0001>
module attributes {stable_mosaic.version = 11 : i64} {
  func.func @_fused_kernel(%arg0: i32, %arg1: memref<8x32xf32, #tpu.memory_space<vmem>>, %arg2: memref<32x8xf32, #tpu.memory_space<vmem>>, %arg3: memref<1x8xf32, #tpu.memory_space<vmem>>, %arg4: memref<8x8xf32, #tpu.memory_space<vmem>>) attributes {dimension_semantics = [#tpu.dimension_semantics<parallel>], iteration_bounds = array<i64: 1>, scalar_prefetch = 0 : i64, scratch_operands = 0 : i64, tpu.core_type = #tpu.core_type<tc>, window_params = [{transform_indices = @transform_0, window_bounds = array<i64: 8, 32>}, {pipeline_mode = #tpu.pipeline_mode<synchronous>, transform_indices = @transform_1, window_bounds = array<i64: 32, 8>}, {pipeline_mode = #tpu.pipeline_mode<synchronous>, transform_indices = @transform_2, window_bounds = array<i64: 1, 8>}, {transform_indices = @transform_3, window_bounds = array<i64: 8, 8>}]} {
    %c0 = arith.constant 0 : index
    %c0_0 = arith.constant 0 : index
    %0 = vector.load %arg1[%c0, %c0_0] : memref<8x32xf32, #tpu.memory_space<vmem>>, vector<8x32xf32>
    %c0_1 = arith.constant 0 : index
    %c0_2 = arith.constant 0 : index
    %1 = vector.load %arg2[%c0_1, %c0_2] : memref<32x8xf32, #tpu.memory_space<vmem>>, vector<32x8xf32>
    %cst = arith.constant dense<0.000000e+00> : vector<8x8xf32>
    %2 = tpu.matmul %0, %1, %cst {dimension_numbers = #tpu.dot_dimension_numbers<[1], [0], [0], [1], [0, 0, 1, 1], [], []>} : vector<8x32xf32>, vector<32x8xf32>, vector<8x8xf32> -> vector<8x8xf32>
    %c0_3 = arith.constant 0 : index
    %c0_4 = arith.constant 0 : index
    %3 = vector.load %arg3[%c0_3, %c0_4] : memref<1x8xf32, #tpu.memory_space<vmem>>, vector<1x8xf32>
    %4 = vector.broadcast %3 : vector<1x8xf32> to vector<8x8xf32>
    %5 = arith.addf %2, %4 : vector<8x8xf32>
    %cst_5 = arith.constant dense<0xFF800000> : vector<8xf32>
    %6 = vector.multi_reduction <maximumf>, %5, %cst_5 [1] : vector<8x8xf32> to vector<8xf32>
    %7 = vector.shape_cast %6 : vector<8xf32> to vector<8x1xf32>
    %8 = vector.broadcast %7 : vector<8x1xf32> to vector<8x8xf32>
    %9 = arith.subf %5, %8 : vector<8x8xf32>
    %10 = math.exp %9 : vector<8x8xf32>
    %cst_6 = arith.constant dense<0.000000e+00> : vector<8xf32>
    %11 = vector.multi_reduction <add>, %10, %cst_6 [1] : vector<8x8xf32> to vector<8xf32>
    %12 = vector.shape_cast %11 : vector<8xf32> to vector<8x1xf32>
    %13 = tpu.reciprocal %12 {approx = true} : vector<8x1xf32> -> vector<8x1xf32>
    %14 = vector.broadcast %13 : vector<8x1xf32> to vector<8x8xf32>
    %15 = arith.mulf %10, %14 : vector<8x8xf32>
    %c0_7 = arith.constant 0 : index
    %c0_8 = arith.constant 0 : index
    %16 = vector.load %arg4[%c0_7, %c0_8] : memref<8x8xf32, #tpu.memory_space<vmem>>, vector<8x8xf32>
    tpu.vector_store %arg4[%c0_7, %c0_8], %15 {strides = array<i32>} : memref<8x8xf32, #tpu.memory_space<vmem>>, vector<8x8xf32>,
    return
  }
  func.func @transform_0(%arg0: i32) -> (i32, i32) {
    %c0_i32 = arith.constant 0 : i32
    %c0_i32_0 = arith.constant 0 : i32
    return %arg0, %c0_i32 : i32, i32
  }
  func.func @transform_1(%arg0: i32) -> (i32, i32) {
    %c0_i32 = arith.constant 0 : i32
    %c0_i32_0 = arith.constant 0 : i32
    %c0_i32_1 = arith.constant 0 : i32
    return %c0_i32, %c0_i32_0 : i32, i32
  }
  func.func @transform_2(%arg0: i32) -> (i32, i32) {
    %c0_i32 = arith.constant 0 : i32
    %c0_i32_0 = arith.constant 0 : i32
    %c0_i32_1 = arith.constant 0 : i32
    return %c0_i32, %c0_i32_0 : i32, i32
  }
  func.func @transform_3(%arg0: i32) -> (i32, i32) {
    %c0_i32 = arith.constant 0 : i32
    %c0_i32_0 = arith.constant 0 : i32
    return %arg0, %c0_i32 : i32, i32
  }
}

</mosaic_0001>

<llo_original>
// kernel: tpu_custom_call.1
$region0: #{tpu_custom_call.1}
  #allocation0 [shape = 'u32[]', space=smem, size = 0x4, offset = 0x4, fixed_abs, tag = 'smem constant byte address 0x4 - core index']
  #allocation1 [shape = 'u32[72,128]{1,0:T(1,128)}', space=vmem, size = 0x9000, scoped, tag = 'internal scratch']
  %s0 = inlined_call_operand.vmem [shape: f32[8,32], index: 0, kind: input, shape index: {}]
  %s1 = inlined_call_operand.vmem [shape: f32[32,8], index: 1, kind: input, shape index: {}]
  %s2 = inlined_call_operand.vmem [shape: f32[1,8], index: 2, kind: input, shape index: {}]
  %s3 = inlined_call_operand.hbm [shape: f32[8,8], index: 3, kind: output, shape index: {}]
  %s4 = sld [smem:[#allocation0]]
  $region22: #{tpu_custom_call.1} parent=0
    _
  %s6 = ssub.s32 1, %s4
  %s7 = scalar_select 0, %s6, %s4
  $region1: #{tpu_custom_call.1} parent=0
    #allocation2 [shape = 'u8[4096]{0}', space=vmem, size = 0x1000, scoped, tag = 'output window, operand 0, single buffered']
    #allocation3 [shape = 's32[1]{0}', space=sflag, size = 0x4, scoped, tag = 'scoped memory for tpu_custom_call.1']
    %8 = vsyncpa [#allocation3], 0
    // Predicated region
    $region2: #{tpu_custom_call.1} parent=1 // pred_check
      _
    $region3: #{tpu_custom_call.1} parent=1 // pred_check_branch
      %10 = sbr.rel (0) target = $region5
    $region4: #{tpu_custom_call.1} parent=1 // pred_region
      _
    $region5: #{tpu_custom_call.1} parent=1 // pred_fallthru
      _
    // Predicated region
    $region6: #{tpu_custom_call.1} parent=1 // pred_check
      _
    $region7: #{tpu_custom_call.1} parent=1 // pred_check_branch
      %12 = sbr.rel (0) target = $region9
    $region8: #{tpu_custom_call.1} parent=1 // pred_region
      _
    $region9: #{tpu_custom_call.1} parent=1 // pred_fallthru
      _
    // Predicated region
    $region10: #{tpu_custom_call.1} parent=1 // pred_check
      _
    $region11: #{tpu_custom_call.1} parent=1 // pred_check_branch
      %14 = sbr.rel (0) target = $region13
    $region12: #{tpu_custom_call.1} parent=1 // pred_region
      _
    $region13: #{tpu_custom_call.1} parent=1 // pred_fallthru
      _
    %v15 = vld [vmem:[%s0] sm:$0xff]
    %v16 = vld [vmem:[%s1] sm:$0xff]
    %v17 = vld [vmem:[%s1 + $0x8] sm:$0xff]
    %v18 = vld [vmem:[%s1 + $0x10] sm:$0xff]
    %v19 = vld [vmem:[%s1 + $0x18] sm:$0xff]
    %v20 = vld [vmem:[%s2] sm:$0x1]
    %v22 = vperm.slane %v20, 0
    %vm24 = vcmask 261120
    %v26 = vsel %vm24, %v15, 0
    %28 = vmatpush.msra.mxu0 0.0
    %29 = vmatpush.msra.mxu0 0.0
    %30 = vmatpush.msra.mxu0 0.0
    %31 = vmatpush.msra.mxu0 0.0
    %32 = vmatpush.msra.mxu0 0.0
    %33 = vmatpush.msra.mxu0 0.0
    %34 = vmatpush.msra.mxu0 0.0
    %35 = vmatpush.msra.mxu0 0.0
    %36 = vmatpush.msra.mxu0 0.0
    %37 = vmatpush.msra.mxu0 0.0
    %38 = vmatpush.msra.mxu0 0.0
    %39 = vmatpush.msra.mxu0 0.0
    %40 = vmatpush.msra.mxu0 %v19
    %41 = vmatpush.msra.mxu0 %v18
    %42 = vmatpush.msra.mxu0 %v17
    %43 = vmatpush.msra.mxu0 %v16
    %44 = vmatmul.f32.gmra.mxu0 %v26
    %v45 = vpop.f32.mrf.mxu0
    %v46 = vadd.f32 %v22, %v45
    %47 = vdwg.mxu0
    %vm48 = vcmask 64512
    %v49 = vsel %vm48, %v46, -inf
    %50 = vmax.xlane.f32.xlu0 %v49
    %v51 = vpop.xlane.xlu0 %50
    %v52 = vsub.f32 %v46, %v51
    %v53 = vmul.f32 %v52, 1.442695
    %v54 = vpow.pop %v53
    %v55 = vsel %vm48, %v54, 0.0
    %56 = vadd.xlane.f32.xlu0 %v55
    %v57 = vpop.xlane.xlu0 %56
    %v58 = vrcp.pop %v57
    %v59 = vmul.f32 %v54, %v58
    %60 = vst.msk [vmem:[#allocation2] sm:$0xff] %vm48, %v59
    // Predicated region
    $region14: #{tpu_custom_call.1} parent=1 // pred_check
      _
    $region15: #{tpu_custom_call.1} parent=1 // pred_check_branch
      %62 = sbr.rel (0) target = $region17
    $region16: #{tpu_custom_call.1} parent=1 // pred_region
      %64 = vsyncadd [#allocation3], 0
      %s66 = sshll.u32 [#allocation2], 4
      %s67 = int_to_ptr.vmem [resolvable:$true] %s66
      %s68 = sshll.u32 %s3, 4
      %s69 = int_to_ptr.hbm [resolvable:$true] %s68
      %71 = dma.vmem_to_hbm [thread:$0]  %s67, 128, %s69, [#allocation3]
    $region17: #{tpu_custom_call.1} parent=1 // pred_fallthru
      _
    // Predicated region
    $region18: #{tpu_custom_call.1} parent=1 // pred_check
      _
    $region19: #{tpu_custom_call.1} parent=1 // pred_check_branch
      %73 = sbr.rel (0) target = $region21
    $region20: #{tpu_custom_call.1} parent=1 // pred_region
      %75 = dma.done [#allocation3], 128
    $region21: #{tpu_custom_call.1} parent=1 // pred_fallthru
      _
    %76 = vsyncpa [#allocation3], 1

</llo_original>
